<compile_context>
chip_gen: v6e
topology: v6e:2x2x1
jax: 0.10.0
libtpu: 0.0.40
codegen_flags: <defaults>
</compile_context>

<pallas_src>
import functools

import jax
import jax.numpy as jnp
from jax.experimental import pallas as pl
from jax.experimental.pallas import tpu as pltpu

LANE = 128
OUT_DIM = 80
MAX_TM = 512  # row-tile cap: tiny VMEM footprint, good pipelining (~85% HBM roofline regime)

# Layer widths of the encoder+decoder chain: F -> 60 -> 40 -> 20 -> 40 -> 60 -> 80
_RELU = (True, True, False, True, True, False)


def _layer_dims(mfcc_feature_dim):
    return [mfcc_feature_dim, 60, 40, 20, 40, 60, 80]


def _round_up(n, m):
    return ((n + m - 1) // m) * m


def _pad2d(a, rows, cols):
    return jnp.pad(a, ((0, rows - a.shape[0]), (0, cols - a.shape[1])))


# ---------------------------------------------------------------------------
# Kernel
# ---------------------------------------------------------------------------
def _autoencoder_kernel(x_ref, w1_ref, wrest_ref, b_ref, o_ref):
    """Full 6-layer MLP chain on one [tm, F] row tile.

    x_ref     : [tm, F]           activations (unpadded feature dim)
    w1_ref    : [F, 128]          layer-1 weight (out-dim zero-padded to 128)
    wrest_ref : [128, 5*128]      layers 2..6, each [128,128] zero-padded, concat on lanes
    b_ref     : [1, 6*128]        all 6 biases, each zero-padded to 128, concat on lanes
    o_ref     : [tm, 128]         layer-6 output (lanes 80..127 are zero)
    """
    h = x_ref[...]
    # layer 1: [tm, F] @ [F, 128]
    h = jnp.dot(h, w1_ref[...], preferred_element_type=jnp.float32) + b_ref[:, 0:LANE]
    h = jnp.maximum(h, 0.0)
    # layers 2..6: static lane-aligned slices of the packed slabs (zero runtime cost)
    for k in range(5):
        w_k = wrest_ref[:, k * LANE:(k + 1) * LANE]
        b_k = b_ref[:, (k + 1) * LANE:(k + 2) * LANE]
        h = jnp.dot(h, w_k, preferred_element_type=jnp.float32) + b_k
        if _RELU[k + 1]:
            h = jnp.maximum(h, 0.0)
    o_ref[...] = h.astype(o_ref.dtype)


# ---------------------------------------------------------------------------
# Parameters
# ---------------------------------------------------------------------------
def init_params(key, mfcc_feature_dim):
    """Deterministic nn.Linear-style init: U(-1/sqrt(fan_in), 1/sqrt(fan_in)).

    Weights are stored as [in, out] (already transposed vs. torch's [out, in]).
    """
    dims = _layer_dims(mfcc_feature_dim)
    params = []
    keys = jax.random.split(key, len(dims) - 1)
    for k, d_in, d_out in zip(keys, dims[:-1], dims[1:]):
        kw, kb = jax.random.split(k)
        bound = 1.0 / jnp.sqrt(float(d_in))
        w = jax.random.uniform(kw, (d_in, d_out), jnp.float32, -bound, bound)
        b = jax.random.uniform(kb, (d_out,), jnp.float32, -bound, bound)
        params.append((w, b))
    return params


def prepare_params(params):
    """One-time packing of the 6 (w, b) pairs into 3 kernel inputs.

    Zero padding of the unused in/out lanes keeps padded lanes exactly 0
    through the whole chain (relu(0*w + 0) == 0), so no masking is needed.
    """
    w1, b1 = params[0]
    # w1 keeps its true in-dim (no host-side activation lane pad needed)
    w1p = jnp.pad(w1, ((0, 0), (0, LANE - w1.shape[1])))               # [F, 128]
    bs = [jnp.pad(b1[None, :], ((0, 0), (0, LANE - b1.shape[0])))]
    ws = []
    for w, b in params[1:]:
        ws.append(_pad2d(w, LANE, LANE))                               # [128, 128]
        bs.append(jnp.pad(b[None, :], ((0, 0), (0, LANE - b.shape[0]))))
    w_rest = jnp.concatenate(ws, axis=1)                               # [128, 5*128]
    b_all = jnp.concatenate(bs, axis=1)                                # [1, 6*128]
    return w1p, w_rest, b_all


# ---------------------------------------------------------------------------
# Forward
# ---------------------------------------------------------------------------
@jax.jit
def autoencoder_forward(x, w1p, w_rest, b_all, rand_key):
    """x: [B, T, F] float32.  Returns (decoded [B, T, 80], logits [B, 2])."""
    B, T, F = x.shape
    N = B * T

    # Row tile: multiple of 8, capped at MAX_TM, and chosen so the grid has at
    # least 2 steps whenever possible (pipelining + megacore sharding on v7x).
    tm = min(MAX_TM, max(8, _round_up(-(-N // 2), 8)))
    n_pad = _round_up(N, tm)
    grid = (pl.cdiv(n_pad, tm),)

    x_flat = jnp.pad(x.reshape(N, F), ((0, n_pad - N), (0, 0)))        # [n_pad, F]

    out_pad = pl.pallas_call(
        _autoencoder_kernel,
        out_shape=jax.ShapeDtypeStruct((n_pad, LANE), jnp.float32),
        grid=grid,
        in_specs=[
            pl.BlockSpec((tm, F), lambda i: (i, 0)),          # activations: tiled rows
            pl.BlockSpec((F, LANE), lambda i: (0, 0)),        # W1: resident across steps
            pl.BlockSpec((LANE, 5 * LANE), lambda i: (0, 0)),  # W2..W6 slab: resident
            pl.BlockSpec((1, 6 * LANE), lambda i: (0, 0)),    # biases slab: resident
        ],
        out_specs=pl.BlockSpec((tm, LANE), lambda i: (i, 0)),  # lane-dense (unmasked vst)
        compiler_params=pltpu.CompilerParams(
            dimension_semantics=("parallel",)),
    )(x_flat, w1p, w_rest, b_all)

    decoded = out_pad[:N, :OUT_DIM].reshape(B, T, OUT_DIM)

    # torch.rand([B, 2]) equivalent: uniform [0, 1) random logits (plain-JAX
    # glue; it is RNG, not a Pallas hot path).
    sex_classifier_logits = jax.random.uniform(rand_key, (B, 2), jnp.float32)
    return decoded, sex_classifier_logits


# ---------------------------------------------------------------------------
# Pure-JAX reference (deterministic part only)
# ---------------------------------------------------------------------------
def _reference_forward(x, params):
    h = x
    h = jax.nn.relu(h @ params[0][0] + params[0][1])
    h = jax.nn.relu(h @ params[1][0] + params[1][1])
    h = h @ params[2][0] + params[2][1]
    h = jax.nn.relu(h @ params[3][0] + params[3][1])
    h = jax.nn.relu(h @ params[4][0] + params[4][1])
    h = h @ params[5][0] + params[5][1]
    return h


if __name__ == "__main__":
    B, T, F = 2, 16, 80   # batch, time frames, mfcc_feature_dim
    key = jax.random.PRNGKey(0)
    kx, kp, kr = jax.random.split(key, 3)

    x = jax.random.normal(kx, (B, T, F), dtype=jnp.float32)
    params = init_params(kp, F)
    w1p, w_rest, b_all = prepare_params(params)   # one-time packing (outside jit)

    decoded, logits = autoencoder_forward(x, w1p, w_rest, b_all, kr)
    jax.block_until_ready((decoded, logits))

    assert decoded.shape == (B, T, OUT_DIM), decoded.shape
    assert logits.shape == (B, 2), logits.shape

    ref = _reference_forward(x, params)
    assert jnp.allclose(decoded, ref, atol=1e-4, rtol=1e-4), \
        float(jnp.max(jnp.abs(decoded - ref)))

    print("KERNEL_OK")
</pallas_src>

<mosaic_0001>
module attributes {stable_mosaic.version = 11 : i64} {
  func.func @_autoencoder_kernel(%arg0: i32, %arg1: memref<16x80xf32, #tpu.memory_space<vmem>>, %arg2: memref<80x128xf32, #tpu.memory_space<vmem>>, %arg3: memref<128x640xf32, #tpu.memory_space<vmem>>, %arg4: memref<1x768xf32, #tpu.memory_space<vmem>>, %arg5: memref<16x128xf32, #tpu.memory_space<vmem>>) attributes {dimension_semantics = [#tpu.dimension_semantics<parallel>], iteration_bounds = array<i64: 2>, scalar_prefetch = 0 : i64, scratch_operands = 0 : i64, tpu.core_type = #tpu.core_type<tc>, window_params = [{transform_indices = @transform_0, window_bounds = array<i64: 16, 80>}, {pipeline_mode = #tpu.pipeline_mode<synchronous>, transform_indices = @transform_1, window_bounds = array<i64: 80, 128>}, {pipeline_mode = #tpu.pipeline_mode<synchronous>, transform_indices = @transform_2, window_bounds = array<i64: 128, 640>}, {pipeline_mode = #tpu.pipeline_mode<synchronous>, transform_indices = @transform_3, window_bounds = array<i64: 1, 768>}, {transform_indices = @transform_4, window_bounds = array<i64: 16, 128>}]} {
    %c0 = arith.constant 0 : index
    %c0_0 = arith.constant 0 : index
    %0 = vector.load %arg1[%c0, %c0_0] : memref<16x80xf32, #tpu.memory_space<vmem>>, vector<16x80xf32>
    %c0_1 = arith.constant 0 : index
    %c0_2 = arith.constant 0 : index
    %1 = vector.load %arg2[%c0_1, %c0_2] : memref<80x128xf32, #tpu.memory_space<vmem>>, vector<80x128xf32>
    %cst = arith.constant dense<0.000000e+00> : vector<16x128xf32>
    %2 = tpu.matmul %0, %1, %cst {dimension_numbers = #tpu.dot_dimension_numbers<[1], [0], [0], [1], [0, 0, 1, 1], [], []>} : vector<16x80xf32>, vector<80x128xf32>, vector<16x128xf32> -> vector<16x128xf32>
    %c0_3 = arith.constant 0 : index
    %c0_4 = arith.constant 0 : index
    %3 = vector.load %arg4[%c0_3, %c0_4] : memref<1x768xf32, #tpu.memory_space<vmem>>, vector<1x128xf32>
    %4 = vector.broadcast %3 : vector<1x128xf32> to vector<16x128xf32>
    %5 = arith.addf %2, %4 : vector<16x128xf32>
    %cst_5 = arith.constant 0.000000e+00 : f32
    %6 = vector.broadcast %cst_5 : f32 to vector<16x128xf32>
    %7 = arith.maximumf %5, %6 : vector<16x128xf32>
    %c0_6 = arith.constant 0 : index
    %c0_7 = arith.constant 0 : index
    %8 = vector.load %arg3[%c0_6, %c0_7] : memref<128x640xf32, #tpu.memory_space<vmem>>, vector<128x128xf32>
    %c0_8 = arith.constant 0 : index
    %c128 = arith.constant 128 : index
    %9 = vector.load %arg4[%c0_8, %c128] : memref<1x768xf32, #tpu.memory_space<vmem>>, vector<1x128xf32>
    %cst_9 = arith.constant dense<0.000000e+00> : vector<16x128xf32>
    %10 = tpu.matmul %7, %8, %cst_9 {dimension_numbers = #tpu.dot_dimension_numbers<[1], [0], [0], [1], [0, 0, 1, 1], [], []>} : vector<16x128xf32>, vector<128x128xf32>, vector<16x128xf32> -> vector<16x128xf32>
    %11 = vector.broadcast %9 : vector<1x128xf32> to vector<16x128xf32>
    %12 = arith.addf %10, %11 : vector<16x128xf32>
    %cst_10 = arith.constant 0.000000e+00 : f32
    %13 = vector.broadcast %cst_10 : f32 to vector<16x128xf32>
    %14 = arith.maximumf %12, %13 : vector<16x128xf32>
    %c0_11 = arith.constant 0 : index
    %c128_12 = arith.constant 128 : index
    %15 = vector.load %arg3[%c0_11, %c128_12] : memref<128x640xf32, #tpu.memory_space<vmem>>, vector<128x128xf32>
    %c0_13 = arith.constant 0 : index
    %c256 = arith.constant 256 : index
    %16 = vector.load %arg4[%c0_13, %c256] : memref<1x768xf32, #tpu.memory_space<vmem>>, vector<1x128xf32>
    %cst_14 = arith.constant dense<0.000000e+00> : vector<16x128xf32>
    %17 = tpu.matmul %14, %15, %cst_14 {dimension_numbers = #tpu.dot_dimension_numbers<[1], [0], [0], [1], [0, 0, 1, 1], [], []>} : vector<16x128xf32>, vector<128x128xf32>, vector<16x128xf32> -> vector<16x128xf32>
    %18 = vector.broadcast %16 : vector<1x128xf32> to vector<16x128xf32>
    %19 = arith.addf %17, %18 : vector<16x128xf32>
    %c0_15 = arith.constant 0 : index
    %c256_16 = arith.constant 256 : index
    %20 = vector.load %arg3[%c0_15, %c256_16] : memref<128x640xf32, #tpu.memory_space<vmem>>, vector<128x128xf32>
    %c0_17 = arith.constant 0 : index
    %c384 = arith.constant 384 : index
    %21 = vector.load %arg4[%c0_17, %c384] : memref<1x768xf32, #tpu.memory_space<vmem>>, vector<1x128xf32>
    %cst_18 = arith.constant dense<0.000000e+00> : vector<16x128xf32>
    %22 = tpu.matmul %19, %20, %cst_18 {dimension_numbers = #tpu.dot_dimension_numbers<[1], [0], [0], [1], [0, 0, 1, 1], [], []>} : vector<16x128xf32>, vector<128x128xf32>, vector<16x128xf32> -> vector<16x128xf32>
    %23 = vector.broadcast %21 : vector<1x128xf32> to vector<16x128xf32>
    %24 = arith.addf %22, %23 : vector<16x128xf32>
    %cst_19 = arith.constant 0.000000e+00 : f32
    %25 = vector.broadcast %cst_19 : f32 to vector<16x128xf32>
    %26 = arith.maximumf %24, %25 : vector<16x128xf32>
    %c0_20 = arith.constant 0 : index
    %c384_21 = arith.constant 384 : index
    %27 = vector.load %arg3[%c0_20, %c384_21] : memref<128x640xf32, #tpu.memory_space<vmem>>, vector<128x128xf32>
    %c0_22 = arith.constant 0 : index
    %c512 = arith.constant 512 : index
    %28 = vector.load %arg4[%c0_22, %c512] : memref<1x768xf32, #tpu.memory_space<vmem>>, vector<1x128xf32>
    %cst_23 = arith.constant dense<0.000000e+00> : vector<16x128xf32>
    %29 = tpu.matmul %26, %27, %cst_23 {dimension_numbers = #tpu.dot_dimension_numbers<[1], [0], [0], [1], [0, 0, 1, 1], [], []>} : vector<16x128xf32>, vector<128x128xf32>, vector<16x128xf32> -> vector<16x128xf32>
    %30 = vector.broadcast %28 : vector<1x128xf32> to vector<16x128xf32>
    %31 = arith.addf %29, %30 : vector<16x128xf32>
    %cst_24 = arith.constant 0.000000e+00 : f32
    %32 = vector.broadcast %cst_24 : f32 to vector<16x128xf32>
    %33 = arith.maximumf %31, %32 : vector<16x128xf32>
    %c0_25 = arith.constant 0 : index
    %c512_26 = arith.constant 512 : index
    %34 = vector.load %arg3[%c0_25, %c512_26] : memref<128x640xf32, #tpu.memory_space<vmem>>, vector<128x128xf32>
    %c0_27 = arith.constant 0 : index
    %c640 = arith.constant 640 : index
    %35 = vector.load %arg4[%c0_27, %c640] : memref<1x768xf32, #tpu.memory_space<vmem>>, vector<1x128xf32>
    %cst_28 = arith.constant dense<0.000000e+00> : vector<16x128xf32>
    %36 = tpu.matmul %33, %34, %cst_28 {dimension_numbers = #tpu.dot_dimension_numbers<[1], [0], [0], [1], [0, 0, 1, 1], [], []>} : vector<16x128xf32>, vector<128x128xf32>, vector<16x128xf32> -> vector<16x128xf32>
    %37 = vector.broadcast %35 : vector<1x128xf32> to vector<16x128xf32>
    %38 = arith.addf %36, %37 : vector<16x128xf32>
    %c0_29 = arith.constant 0 : index
    %c0_30 = arith.constant 0 : index
    %39 = vector.load %arg5[%c0_29, %c0_30] : memref<16x128xf32, #tpu.memory_space<vmem>>, vector<16x128xf32>
    tpu.vector_store %arg5[%c0_29, %c0_30], %38 {strides = array<i32>} : memref<16x128xf32, #tpu.memory_space<vmem>>, vector<16x128xf32>,
    return
  }
  func.func @transform_0(%arg0: i32) -> (i32, i32) {
    %c0_i32 = arith.constant 0 : i32
    %c0_i32_0 = arith.constant 0 : i32
    return %arg0, %c0_i32 : i32, i32
  }
  func.func @transform_1(%arg0: i32) -> (i32, i32) {
    %c0_i32 = arith.constant 0 : i32
    %c0_i32_0 = arith.constant 0 : i32
    %c0_i32_1 = arith.constant 0 : i32
    return %c0_i32, %c0_i32_0 : i32, i32
  }
  func.func @transform_2(%arg0: i32) -> (i32, i32) {
    %c0_i32 = arith.constant 0 : i32
    %c0_i32_0 = arith.constant 0 : i32
    %c0_i32_1 = arith.constant 0 : i32
    return %c0_i32, %c0_i32_0 : i32, i32
  }
  func.func @transform_3(%arg0: i32) -> (i32, i32) {
    %c0_i32 = arith.constant 0 : i32
    %c0_i32_0 = arith.constant 0 : i32
    %c0_i32_1 = arith.constant 0 : i32
    return %c0_i32, %c0_i32_0 : i32, i32
  }
  func.func @transform_4(%arg0: i32) -> (i32, i32) {
    %c0_i32 = arith.constant 0 : i32
    %c0_i32_0 = arith.constant 0 : i32
    return %arg0, %c0_i32 : i32, i32
  }
}

</mosaic_0001>

<llo_original>
// kernel: autoencoder_forward.1
$region0: #{autoencoder_forward.1}
  #allocation0 [shape = 'u32[]', space=smem, size = 0x4, offset = 0x4, fixed_abs, tag = 'smem constant byte address 0x4 - core index']
  #allocation1 [shape = 'u32[144,128]{1,0:T(1,128)}', space=vmem, size = 0x12000, scoped, tag = 'internal scratch']
  %s0 = inlined_call_operand.vmem [shape: f32[32,80], index: 0, kind: input, shape index: {}]
  %s1 = inlined_call_operand.hbm [shape: f32[80,128], index: 1, kind: input, shape index: {}]
  %s2 = inlined_call_operand.hbm [shape: f32[128,640], index: 2, kind: input, shape index: {}]
  %s3 = inlined_call_operand.vmem [shape: f32[1,768], index: 3, kind: input, shape index: {}]
  %s4 = inlined_call_operand.hbm [shape: f32[32,128], index: 4, kind: output, shape index: {}]
  %s5 = sld [smem:[#allocation0]]
  $region57: #{autoencoder_forward.1} parent=0
    _
  %s7 = ssub.s32 1, %s5
  %s8 = scalar_select 0, %s7, %s5
  $region1: #{autoencoder_forward.1} parent=0
    #allocation2 [shape = 'u8[40960]{0}', space=vmem, size = 0xa000, scoped, tag = 'input window, operand 1, single buffered']
    #allocation3 [shape = 's32[2]{0}', space=sflag, size = 0x8, scoped, tag = 'scoped memory for autoencoder_forward.1']
    #allocation4 [shape = 's32[2]{0}', space=sflag, size = 0x8, scoped, tag = 'scoped memory for autoencoder_forward.1']
    #allocation5 [shape = 'u8[327680]{0}', space=vmem, size = 0x50000, scoped, tag = 'input window, operand 2, single buffered']
    #allocation6 [shape = 's32[1]{0}', space=sflag, size = 0x4, scoped, tag = 'scoped memory for autoencoder_forward.1']
    #allocation7 [shape = 'u8[16384]{0}', space=vmem, size = 0x4000, scoped, tag = 'output window, operand 0']
    %9 = vsyncpa [#allocation3], 0
    %10 = vsyncpa [#allocation6], 0
    %11 = vsyncpa [#allocation4], 0
    %s12 = scalar_lea.sflag [#allocation4], 1
    %13 = vsyncpa %s12, 0
    loop: start=0, step=1, limit=4
    $region2: #{autoencoder_forward.1} parent=1 // loop_pre_header
      _
    $region3: #{autoencoder_forward.1} parent=1 // loop_header
      %s15 = sphi 0, %s19
      %p16 = scmp.ge.s32.totalorder %s15, 4
      %s25 = sphi 0, %s27
      %s28 = sphi 0, %s25
      %s29 = sphi 0, %s28
      %s45 = sphi 0, %s29
      %s49 = sphi 0, %s49
      %s51 = sphi 0, %s49
      %s52 = sphi 0, %s51
      %s66 = sphi 0, %s52
      %s70 = sphi 0, %s70
      %s72 = sphi 0, %s70
      %s73 = sphi 0, %s72
      %s87 = sphi 0, %s73
      %s91 = sphi 0, %s91
      %s93 = sphi 0, %s91
      %s94 = sphi 0, %s93
      %s108 = sphi 0, %s94
      %s114 = sphi 0, %s116
      %s117 = sphi 0, %s114
      %s118 = sphi 0, %s117
      %s134 = sphi 0, %s118
    $region4: #{autoencoder_forward.1} parent=1 // loop_header_branch
      %18 = sbr.rel (%p16) target = $region8
    $region5: #{autoencoder_forward.1} parent=1 // loop_body
      %s20 = ssub.s32 %s15, 1
      %s21 = ssub.s32 %s15, 2
      %s22 = sadd.s32 %s15, 1
      %s23 = ssub.s32 %s15, %s22
      %p24 = scmp.eq.s32.totalorder %s23, 0
      %s26 = sadd.s32 %s25, 1
      %s27 = scalar_select %p24, %s25, %s26
      %p30 = pneg %p24
      %p31 = scmp.eq.s32.totalorder %s15, 1
      %p32 = por %p30, %p31
      %p33 = scmp.ne.s32.totalorder %s25, %s28
      %p34 = scmp.eq.s32.totalorder %s15, 0
      %p35 = por %p33, %p34
      %p36 = scmp.ne.s32.totalorder %s25, %s28
      %p37 = scmp.eq.s32.totalorder %s20, 1
      %p38 = por %p36, %p37
      %p39 = scmp.ne.s32.totalorder %s28, %s29
      %p40 = scmp.eq.s32.totalorder %s20, 0
      %p41 = por %p39, %p40
      %p42 = scmp.ne.s32.totalorder %s28, %s29
      %p43 = scmp.eq.s32.totalorder %s21, 1
      %p44 = por %p42, %p43
      %p46 = scmp.ne.s32.totalorder %s29, %s45
      %p47 = scmp.eq.s32.totalorder %s21, 0
      %p48 = por %p46, %p47
      %s50 = sadd.s32 %s49, 1
      %p53 = scmp.eq.s32.totalorder %s15, 1
      %p54 = scmp.ne.s32.totalorder %s49, %s51
      %p55 = scmp.eq.s32.totalorder %s15, 0
      %p56 = por %p54, %p55
      %p57 = scmp.ne.s32.totalorder %s49, %s51
      %p58 = scmp.eq.s32.totalorder %s20, 1
      %p59 = por %p57, %p58
      %p60 = scmp.ne.s32.totalorder %s51, %s52
      %p61 = scmp.eq.s32.totalorder %s20, 0
      %p62 = por %p60, %p61
      %p63 = scmp.ne.s32.totalorder %s51, %s52
      %p64 = scmp.eq.s32.totalorder %s21, 1
      %p65 = por %p63, %p64
      %p67 = scmp.ne.s32.totalorder %s52, %s66
      %p68 = scmp.eq.s32.totalorder %s21, 0
      %p69 = por %p67, %p68
      %s71 = sadd.s32 %s70, 1
      %p74 = scmp.eq.s32.totalorder %s15, 1
      %p75 = scmp.ne.s32.totalorder %s70, %s72
      %p76 = scmp.eq.s32.totalorder %s15, 0
      %p77 = por %p75, %p76
      %p78 = scmp.ne.s32.totalorder %s70, %s72
      %p79 = scmp.eq.s32.totalorder %s20, 1
      %p80 = por %p78, %p79
      %p81 = scmp.ne.s32.totalorder %s72, %s73
      %p82 = scmp.eq.s32.totalorder %s20, 0
      %p83 = por %p81, %p82
      %p84 = scmp.ne.s32.totalorder %s72, %s73
      %p85 = scmp.eq.s32.totalorder %s21, 1
      %p86 = por %p84, %p85
      %p88 = scmp.ne.s32.totalorder %s73, %s87
      %p89 = scmp.eq.s32.totalorder %s21, 0
      %p90 = por %p88, %p89
      %s92 = sadd.s32 %s91, 1
      %p95 = scmp.eq.s32.totalorder %s15, 1
      %p96 = scmp.ne.s32.totalorder %s91, %s93
      %p97 = scmp.eq.s32.totalorder %s15, 0
      %p98 = por %p96, %p97
      %p99 = scmp.ne.s32.totalorder %s91, %s93
      %p100 = scmp.eq.s32.totalorder %s20, 1
      %p101 = por %p99, %p100
      %p102 = scmp.ne.s32.totalorder %s93, %s94
      %p103 = scmp.eq.s32.totalorder %s20, 0
      %p104 = por %p102, %p103
      %p105 = scmp.ne.s32.totalorder %s93, %s94
      %p106 = scmp.eq.s32.totalorder %s21, 1
      %p107 = por %p105, %p106
      %p109 = scmp.ne.s32.totalorder %s94, %s108
      %p110 = scmp.eq.s32.totalorder %s21, 0
      %p111 = por %p109, %p110
      %s112 = ssub.s32 %s15, %s22
      %p113 = scmp.eq.s32.totalorder %s112, 0
      %s115 = sadd.s32 %s114, 1
      %s116 = scalar_select %p113, %s114, %s115
      %p119 = pneg %p113
      %p120 = scmp.eq.s32.totalorder %s15, 1
      %p121 = por %p119, %p120
      %p122 = scmp.ne.s32.totalorder %s114, %s117
      %p123 = scmp.eq.s32.totalorder %s15, 0
      %p124 = por %p122, %p123
      %p125 = scmp.ne.s32.totalorder %s114, %s117
      %p126 = scmp.eq.s32.totalorder %s20, 1
      %p127 = por %p125, %p126
      %p128 = scmp.ne.s32.totalorder %s117, %s118
      %p129 = scmp.eq.s32.totalorder %s20, 0
      %p130 = por %p128, %p129
      %p131 = scmp.ne.s32.totalorder %s117, %s118
      %p132 = scmp.eq.s32.totalorder %s21, 1
      %p133 = por %p131, %p132
      %p135 = scmp.ne.s32.totalorder %s118, %s134
      %p136 = scmp.eq.s32.totalorder %s21, 0
      %p137 = por %p135, %p136
      %p138 = scmp.le.s32.totalorder 1, %s15
      %p139 = scmp.lt.s32.totalorder %s15, 3
      %p140 = pnand %p138, %p139
      %p141 = pneg %p140
      // Predicated region
      $region9: #{autoencoder_forward.1} parent=5 // pred_check
        _
      $region10: #{autoencoder_forward.1} parent=5 // pred_check_branch
        %143 = sbr.rel (%p140) target = $region12
      $region11: #{autoencoder_forward.1} parent=5 // pred_region
        %s144 = ssub.s32 %s15, 1
        // Predicated region
        $region13: #{autoencoder_forward.1} parent=11 // pred_check
          %p145 = pneg %p62
        $region14: #{autoencoder_forward.1} parent=11 // pred_check_branch
          %147 = sbr.rel (%p145) target = $region16
        $region15: #{autoencoder_forward.1} parent=11 // pred_region
          %s149 = ssub.s32 1280, 1280
          %150 = vsyncadd [#allocation3], %s149
          %s151 = sshll.u32 [#allocation2], 4
          %s152 = int_to_ptr.vmem [resolvable:$true] %s151
          %157 = dma.hbm_to_vmem [thread:$0]  %s1, 1280, %s152, [#allocation3], 128, 128, 8
        $region16: #{autoencoder_forward.1} parent=11 // pred_fallthru
          _
        // Predicated region
        $region17: #{autoencoder_forward.1} parent=11 // pred_check
          %p158 = pneg %p83
        $region18: #{autoencoder_forward.1} parent=11 // pred_check_branch
          %160 = sbr.rel (%p158) target = $region20
        $region19: #{autoencoder_forward.1} parent=11 // pred_region
          %s162 = ssub.s32 10240, 10240
          %163 = vsyncadd [#allocation6], %s162
          %s164 = sshll.u32 [#allocation5], 4
          %s165 = int_to_ptr.vmem [resolvable:$true] %s164
          %170 = dma.hbm_to_vmem [thread:$0]  %s2, 10240, %s165, [#allocation6], 640, 640, 40
        $region20: #{autoencoder_forward.1} parent=11 // pred_fallthru
          _
        // Predicated region
        $region21: #{autoencoder_forward.1} parent=11 // pred_check
          %p171 = pneg %p104
        $region22: #{autoencoder_forward.1} parent=11 // pred_check_branch
          %173 = sbr.rel (%p171) target = $region24
        $region23: #{autoencoder_forward.1} parent=11 // pred_region
          _
        $region24: #{autoencoder_forward.1} parent=11 // pred_fallthru
          _
      $region12: #{autoencoder_forward.1} parent=5 // pred_fallthru
        _
      %p174 = scmp.lt.s32.totalorder %s15, 2
      // Predicated region
      $region25: #{autoencoder_forward.1} parent=5 // pred_check
        %p175 = pneg %p174
      $region26: #{autoencoder_forward.1} parent=5 // pred_check_branch
        %177 = sbr.rel (%p175) target = $region28
      $region27: #{autoencoder_forward.1} parent=5 // pred_region
        // Predicated region
        $region29: #{autoencoder_forward.1} parent=27 // pred_check
          %p178 = pneg %p35
        $region30: #{autoencoder_forward.1} parent=27 // pred_check_branch
          %180 = sbr.rel (%p178) target = $region32
        $region31: #{autoencoder_forward.1} parent=27 // pred_region
          %s181 = smul.u32 2, %s15
          %p182 = scmp.lt.s32.totalorder %s181, 3
          %s183 = scalar_select %p182, %s181, 3
          %s184 = smul.addr %s183, 8
          %s185 = scalar_lea.vmem %s0, %s184
          %s186 = smul.u32 2, %s15
        $region32: #{autoencoder_forward.1} parent=27 // pred_fallthru
          _
      $region28: #{autoencoder_forward.1} parent=5 // pred_fallthru
        _
      %p187 = scmp.le.s32.totalorder 1, %s15
      %p188 = scmp.lt.s32.totalorder %s15, 3
      %p189 = pnand %p187, %p188
      %p190 = pneg %p189
      // Predicated region
      $region33: #{autoencoder_forward.1} parent=5 // pred_check
        _
      $region34: #{autoencoder_forward.1} parent=5 // pred_check_branch
        %192 = sbr.rel (%p189) target = $region36
      $region35: #{autoencoder_forward.1} parent=5 // pred_region
        %s193 = ssub.s32 %s15, 1
        // Predicated region
        $region37: #{autoencoder_forward.1} parent=35 // pred_check
          %p194 = pneg %p62
        $region38: #{autoencoder_forward.1} parent=35 // pred_check_branch
          %196 = sbr.rel (%p194) target = $region40
        $region39: #{autoencoder_forward.1} parent=35 // pred_region
          %197 = dma.done [#allocation3], 1280
        $region40: #{autoencoder_forward.1} parent=35 // pred_fallthru
          _
        // Predicated region
        $region41: #{autoencoder_forward.1} parent=35 // pred_check
          %p198 = pneg %p83
        $region42: #{autoencoder_forward.1} parent=35 // pred_check_branch
          %200 = sbr.rel (%p198) target = $region44
        $region43: #{autoencoder_forward.1} parent=35 // pred_region
          %201 = dma.done [#allocation6], 10240
        $region44: #{autoencoder_forward.1} parent=35 // pred_fallthru
          _
        %s202 = smul.u32 2, %s20
        %p203 = scmp.lt.s32.totalorder %s202, 3
        %s204 = scalar_select %p203, %s202, 3
        %s205 = smul.addr %s204, 8
        %s206 = scalar_lea.vmem %s0, %s205
        %p207 = pneg %p41
        %p208 = pneg %p38
        %p209 = pneg %p62
        %p210 = pneg %p59
        %p211 = pneg %p83
        %p212 = pneg %p80
        %p213 = pneg %p104
        %p214 = pneg %p101
        %p215 = pneg %p130
        %p216 = pneg %p127
        %s217 = sand.u32 %s117, 1
        %s218 = scalar_lea.sflag [#allocation4], %s217
        %s219 = sand.u32 %s117, 1
        %s220 = smul.addr %s219, 16
        %s221 = scalar_lea.vmem [#allocation7], %s220
        %s222 = smul.u32 2, %s20
        %p223 = scmp.lt.s32.totalorder %s222, 3
        %s224 = scalar_select %p223, %s222, 3
        %s225 = smul.addr %s224, 8
        %s226 = scalar_lea.vmem %s0, %s225
        %s227 = smul.u32 2, %s20
        %s228 = smul.u32 2, %s20
        %v229 = vld [vmem:[%s226] sm:$0xff]
        %v230 = vld [vmem:[%s226 + $0x8] sm:$0xff]
        %v231 = vld [vmem:[#allocation2] sm:$0xff]
        %v232 = vld [vmem:[#allocation2 + $0x8] sm:$0xff]
        %v233 = vld [vmem:[#allocation2 + $0x10] sm:$0xff]
        %v234 = vld [vmem:[#allocation2 + $0x18] sm:$0xff]
        %v235 = vld [vmem:[#allocation2 + $0x20] sm:$0xff]
        %v236 = vld [vmem:[#allocation2 + $0x28] sm:$0xff]
        %v237 = vld [vmem:[#allocation2 + $0x30] sm:$0xff]
        %v238 = vld [vmem:[#allocation2 + $0x38] sm:$0xff]
        %v239 = vld [vmem:[#allocation2 + $0x40] sm:$0xff]
        %v240 = vld [vmem:[#allocation2 + $0x48] sm:$0xff]
        %v241 = vld [vmem:[%s3] sm:$0x1]
        %v243 = vlaneseq
        %v244 = vshrl.u32 %v243, 7
        %v245 = vsub.s32 0, %v244
        %v246 = vrot.slane %v241, %v245
        %vm248 = vcmask 654336
        %v250 = vsel %vm248, %v229, 0
        %v253 = vsel %vm248, %v230, 0
        %255 = vmatprep.subr.mxu0 0.0
        %256 = vmatpush1.msra.mxu0 0.0
        %257 = vmatprep.subr.mxu0 0.0
        %258 = vmatpush1.msra.mxu0 0.0
        %259 = vmatprep.subr.mxu0 0.0
        %260 = vmatpush1.msra.mxu0 0.0
        %261 = vmatprep.subr.mxu0 0.0
        %262 = vmatpush1.msra.mxu0 0.0
        %263 = vmatprep.subr.mxu0 0.0
        %264 = vmatpush1.msra.mxu0 0.0
        %265 = vmatprep.subr.mxu0 0.0
        %266 = vmatpush1.msra.mxu0 0.0
        %267 = vmatprep.subr.mxu0 0.0
        %268 = vmatpush1.msra.mxu0 %v240
        %269 = vmatprep.subr.mxu0 0.0
        %270 = vmatpush1.msra.mxu0 %v239
        %271 = vmatprep.subr.mxu0 0.0
        %272 = vmatpush1.msra.mxu0 %v238
        %273 = vmatprep.subr.mxu0 0.0
        %274 = vmatpush1.msra.mxu0 %v237
        %275 = vmatprep.subr.mxu0 0.0
        %276 = vmatpush1.msra.mxu0 %v236
        %277 = vmatprep.subr.mxu0 0.0
        %278 = vmatpush1.msra.mxu0 %v235
        %279 = vmatprep.subr.mxu0 0.0
        %280 = vmatpush1.msra.mxu0 %v234
        %281 = vmatprep.subr.mxu0 0.0
        %282 = vmatpush1.msra.mxu0 %v233
        %283 = vmatprep.subr.mxu0 0.0
        %284 = vmatpush1.msra.mxu0 %v232
        %285 = vmatprep.subr.mxu0 0.0
        %286 = vmatpush1.msra.mxu0 %v231
        %287 = vmatprep.subr.mxu0 0.0
        %288 = vmatpush2.msra.mxu0 0.0
        %289 = vmatprep.subr.mxu0 0.0
        %290 = vmatpush2.msra.mxu0 0.0
        %291 = vmatprep.subr.mxu0 0.0
        %292 = vmatpush2.msra.mxu0 0.0
        %293 = vmatprep.subr.mxu0 0.0
        %294 = vmatpush2.msra.mxu0 0.0
        %295 = vmatprep.subr.mxu0 0.0
        %296 = vmatpush2.msra.mxu0 0.0
        %297 = vmatprep.subr.mxu0 0.0
        %298 = vmatpush2.msra.mxu0 0.0
        %299 = vmatprep.subr.mxu0 0.0
        %300 = vmatpush2.msra.mxu0 0.0
        %301 = vmatprep.subr.mxu0 0.0
        %302 = vmatpush2.msra.mxu0 0.0
        %303 = vmatprep.subr.mxu0 0.0
        %304 = vmatpush2.msra.mxu0 0.0
        %305 = vmatprep.subr.mxu0 0.0
        %306 = vmatpush2.msra.mxu0 0.0
        %307 = vmatprep.subr.mxu0 0.0
        %308 = vmatpush2.msra.mxu0 0.0
        %309 = vmatprep.subr.mxu0 0.0
        %310 = vmatpush2.msra.mxu0 0.0
        %311 = vmatprep.subr.mxu0 0.0
        %312 = vmatpush2.msra.mxu0 0.0
        %313 = vmatprep.subr.mxu0 0.0
        %314 = vmatpush2.msra.mxu0 0.0
        %315 = vmatprep.subr.mxu0 0.0
        %316 = vmatpush2.msra.mxu0 0.0
        %317 = vmatprep.subr.mxu0 0.0
        %318 = vmatpush2.msra.mxu0 0.0
        %319 = vmatprep.mubr.f32.mxu0 0.0
        %320 = vmatmul.mubr.f32.gmra.mxu0 %v250
        %v321 = vpop.f32.mrf.mxu0
        %v322 = vadd.f32 %v246, %v321
        %v323 = vpop.f32.mrf.mxu0
        %324 = vmatprep.mubr.f32.mxu0 0.0
        %325 = vmatmul.mubr.f32.gmra.mxu0 %v253
        %v326 = vpop.f32.mrf.mxu0
        %v327 = vadd.f32 %v246, %v326
        %v328 = vpop.f32.mrf.mxu0
        %329 = vdwg.mxu0
        %v330 = vmax.f32 %v322, 0.0
        %v331 = vmax.f32 %v327, 0.0
        %v332 = vld [vmem:[#allocation5] sm:$0xff]
        %v333 = vld [vmem:[#allocation5 + $0x28] sm:$0xff]
        %v334 = vld [vmem:[#allocation5 + $0x50] sm:$0xff]
        %v335 = vld [vmem:[#allocation5 + $0x78] sm:$0xff]
        %v336 = vld [vmem:[#allocation5 + $0xa0] sm:$0xff]
        %v337 = vld [vmem:[#allocation5 + $0xc8] sm:$0xff]
        %v338 = vld [vmem:[#allocation5 + $0xf0] sm:$0xff]
        %v339 = vld [vmem:[#allocation5 + $0x118] sm:$0xff]
        %v340 = vld [vmem:[#allocation5 + $0x140] sm:$0xff]
        %v341 = vld [vmem:[#allocation5 + $0x168] sm:$0xff]
        %v342 = vld [vmem:[#allocation5 + $0x190] sm:$0xff]
        %v343 = vld [vmem:[#allocation5 + $0x1b8] sm:$0xff]
        %v344 = vld [vmem:[#allocation5 + $0x1e0] sm:$0xff]
        %v345 = vld [vmem:[#allocation5 + $0x208] sm:$0xff]
        %v346 = vld [vmem:[#allocation5 + $0x230] sm:$0xff]
        %v347 = vld [vmem:[#allocation5 + $0x258] sm:$0xff]
        %v348 = vld [vmem:[%s3 + $0x1] sm:$0x1]
        %v350 = vlaneseq
        %v351 = vshrl.u32 %v350, 7
        %v352 = vsub.s32 0, %v351
        %v353 = vrot.slane %v348, %v352
        %355 = vmatprep.subr.mxu0 0.0
        %356 = vmatpush1.msra.mxu0 %v347
        %357 = vmatprep.subr.mxu0 0.0
        %358 = vmatpush1.msra.mxu0 %v346
        %359 = vmatprep.subr.mxu0 0.0
        %360 = vmatpush1.msra.mxu0 %v345
        %361 = vmatprep.subr.mxu0 0.0
        %362 = vmatpush1.msra.mxu0 %v344
        %363 = vmatprep.subr.mxu0 0.0
        %364 = vmatpush1.msra.mxu0 %v343
        %365 = vmatprep.subr.mxu0 0.0
        %366 = vmatpush1.msra.mxu0 %v342
        %367 = vmatprep.subr.mxu0 0.0
        %368 = vmatpush1.msra.mxu0 %v341
        %369 = vmatprep.subr.mxu0 0.0
        %370 = vmatpush1.msra.mxu0 %v340
        %371 = vmatprep.subr.mxu0 0.0
        %372 = vmatpush1.msra.mxu0 %v339
        %373 = vmatprep.subr.mxu0 0.0
        %374 = vmatpush1.msra.mxu0 %v338
        %375 = vmatprep.subr.mxu0 0.0
        %376 = vmatpush1.msra.mxu0 %v337
        %377 = vmatprep.subr.mxu0 0.0
        %378 = vmatpush1.msra.mxu0 %v336
        %379 = vmatprep.subr.mxu0 0.0
        %380 = vmatpush1.msra.mxu0 %v335
        %381 = vmatprep.subr.mxu0 0.0
        %382 = vmatpush1.msra.mxu0 %v334
        %383 = vmatprep.subr.mxu0 0.0
        %384 = vmatpush1.msra.mxu0 %v333
        %385 = vmatprep.subr.mxu0 0.0
        %386 = vmatpush1.msra.mxu0 %v332
        %387 = vmatprep.subr.mxu0 0.0
        %388 = vmatpush2.msra.mxu0 0.0
        %389 = vmatprep.subr.mxu0 0.0
        %390 = vmatpush2.msra.mxu0 0.0
        %391 = vmatprep.subr.mxu0 0.0
        %392 = vmatpush2.msra.mxu0 0.0
        %393 = vmatprep.subr.mxu0 0.0
        %394 = vmatpush2.msra.mxu0 0.0
        %395 = vmatprep.subr.mxu0 0.0
        %396 = vmatpush2.msra.mxu0 0.0
        %397 = vmatprep.subr.mxu0 0.0
        %398 = vmatpush2.msra.mxu0 0.0
        %399 = vmatprep.subr.mxu0 0.0
        %400 = vmatpush2.msra.mxu0 0.0
        %401 = vmatprep.subr.mxu0 0.0
        %402 = vmatpush2.msra.mxu0 0.0
        %403 = vmatprep.subr.mxu0 0.0
        %404 = vmatpush2.msra.mxu0 0.0
        %405 = vmatprep.subr.mxu0 0.0
        %406 = vmatpush2.msra.mxu0 0.0
        %407 = vmatprep.subr.mxu0 0.0
        %408 = vmatpush2.msra.mxu0 0.0
        %409 = vmatprep.subr.mxu0 0.0
        %410 = vmatpush2.msra.mxu0 0.0
        %411 = vmatprep.subr.mxu0 0.0
        %412 = vmatpush2.msra.mxu0 0.0
        %413 = vmatprep.subr.mxu0 0.0
        %414 = vmatpush2.msra.mxu0 0.0
        %415 = vmatprep.subr.mxu0 0.0
        %416 = vmatpush2.msra.mxu0 0.0
        %417 = vmatprep.subr.mxu0 0.0
        %418 = vmatpush2.msra.mxu0 0.0
        %419 = vmatprep.mubr.f32.mxu0 0.0
        %420 = vmatmul.mubr.f32.gmra.mxu0 %v330
        %v421 = vpop.f32.mrf.mxu0
        %v422 = vadd.f32 %v353, %v421
        %v423 = vpop.f32.mrf.mxu0
        %424 = vmatprep.mubr.f32.mxu0 0.0
        %425 = vmatmul.mubr.f32.gmra.mxu0 %v331
        %v426 = vpop.f32.mrf.mxu0
        %v427 = vadd.f32 %v353, %v426
        %v428 = vpop.f32.mrf.mxu0
        %429 = vdwg.mxu0
        %v430 = vmax.f32 %v422, 0.0
        %v431 = vmax.f32 %v427, 0.0
        %v432 = vld [vmem:[#allocation5 + $0x8] sm:$0xff]
        %v433 = vld [vmem:[#allocation5 + $0x30] sm:$0xff]
        %v434 = vld [vmem:[#allocation5 + $0x58] sm:$0xff]
        %v435 = vld [vmem:[#allocation5 + $0x80] sm:$0xff]
        %v436 = vld [vmem:[#allocation5 + $0xa8] sm:$0xff]
        %v437 = vld [vmem:[#allocation5 + $0xd0] sm:$0xff]
        %v438 = vld [vmem:[#allocation5 + $0xf8] sm:$0xff]
        %v439 = vld [vmem:[#allocation5 + $0x120] sm:$0xff]
        %v440 = vld [vmem:[#allocation5 + $0x148] sm:$0xff]
        %v441 = vld [vmem:[#allocation5 + $0x170] sm:$0xff]
        %v442 = vld [vmem:[#allocation5 + $0x198] sm:$0xff]
        %v443 = vld [vmem:[#allocation5 + $0x1c0] sm:$0xff]
        %v444 = vld [vmem:[#allocation5 + $0x1e8] sm:$0xff]
        %v445 = vld [vmem:[#allocation5 + $0x210] sm:$0xff]
        %v446 = vld [vmem:[#allocation5 + $0x238] sm:$0xff]
        %v447 = vld [vmem:[#allocation5 + $0x260] sm:$0xff]
        %v448 = vld [vmem:[%s3 + $0x2] sm:$0x1]
        %v450 = vlaneseq
        %v451 = vshrl.u32 %v450, 7
        %v452 = vsub.s32 0, %v451
        %v453 = vrot.slane %v448, %v452
        %455 = vmatprep.subr.mxu0 0.0
        %456 = vmatpush1.msra.mxu0 %v447
        %457 = vmatprep.subr.mxu0 0.0
        %458 = vmatpush1.msra.mxu0 %v446
        %459 = vmatprep.subr.mxu0 0.0
        %460 = vmatpush1.msra.mxu0 %v445
        %461 = vmatprep.subr.mxu0 0.0
        %462 = vmatpush1.msra.mxu0 %v444
        %463 = vmatprep.subr.mxu0 0.0
        %464 = vmatpush1.msra.mxu0 %v443
        %465 = vmatprep.subr.mxu0 0.0
        %466 = vmatpush1.msra.mxu0 %v442
        %467 = vmatprep.subr.mxu0 0.0
        %468 = vmatpush1.msra.mxu0 %v441
        %469 = vmatprep.subr.mxu0 0.0
        %470 = vmatpush1.msra.mxu0 %v440
        %471 = vmatprep.subr.mxu0 0.0
        %472 = vmatpush1.msra.mxu0 %v439
        %473 = vmatprep.subr.mxu0 0.0
        %474 = vmatpush1.msra.mxu0 %v438
        %475 = vmatprep.subr.mxu0 0.0
        %476 = vmatpush1.msra.mxu0 %v437
        %477 = vmatprep.subr.mxu0 0.0
        %478 = vmatpush1.msra.mxu0 %v436
        %479 = vmatprep.subr.mxu0 0.0
        %480 = vmatpush1.msra.mxu0 %v435
        %481 = vmatprep.subr.mxu0 0.0
        %482 = vmatpush1.msra.mxu0 %v434
        %483 = vmatprep.subr.mxu0 0.0
        %484 = vmatpush1.msra.mxu0 %v433
        %485 = vmatprep.subr.mxu0 0.0
        %486 = vmatpush1.msra.mxu0 %v432
        %487 = vmatprep.subr.mxu0 0.0
        %488 = vmatpush2.msra.mxu0 0.0
        %489 = vmatprep.subr.mxu0 0.0
        %490 = vmatpush2.msra.mxu0 0.0
        %491 = vmatprep.subr.mxu0 0.0
        %492 = vmatpush2.msra.mxu0 0.0
        %493 = vmatprep.subr.mxu0 0.0
        %494 = vmatpush2.msra.mxu0 0.0
        %495 = vmatprep.subr.mxu0 0.0
        %496 = vmatpush2.msra.mxu0 0.0
        %497 = vmatprep.subr.mxu0 0.0
        %498 = vmatpush2.msra.mxu0 0.0
        %499 = vmatprep.subr.mxu0 0.0
        %500 = vmatpush2.msra.mxu0 0.0
        %501 = vmatprep.subr.mxu0 0.0
        %502 = vmatpush2.msra.mxu0 0.0
        %503 = vmatprep.subr.mxu0 0.0
        %504 = vmatpush2.msra.mxu0 0.0
        %505 = vmatprep.subr.mxu0 0.0
        %506 = vmatpush2.msra.mxu0 0.0
        %507 = vmatprep.subr.mxu0 0.0
        %508 = vmatpush2.msra.mxu0 0.0
        %509 = vmatprep.subr.mxu0 0.0
        %510 = vmatpush2.msra.mxu0 0.0
        %511 = vmatprep.subr.mxu0 0.0
        %512 = vmatpush2.msra.mxu0 0.0
        %513 = vmatprep.subr.mxu0 0.0
        %514 = vmatpush2.msra.mxu0 0.0
        %515 = vmatprep.subr.mxu0 0.0
        %516 = vmatpush2.msra.mxu0 0.0
        %517 = vmatprep.subr.mxu0 0.0
        %518 = vmatpush2.msra.mxu0 0.0
        %519 = vmatprep.mubr.f32.mxu0 0.0
        %520 = vmatmul.mubr.f32.gmra.mxu0 %v430
        %v521 = vpop.f32.mrf.mxu0
        %v522 = vadd.f32 %v453, %v521
        %v523 = vpop.f32.mrf.mxu0
        %524 = vmatprep.mubr.f32.mxu0 0.0
        %525 = vmatmul.mubr.f32.gmra.mxu0 %v431
        %v526 = vpop.f32.mrf.mxu0
        %v527 = vadd.f32 %v453, %v526
        %v528 = vpop.f32.mrf.mxu0
        %529 = vdwg.mxu0
        %v530 = vld [vmem:[#allocation5 + $0x10] sm:$0xff]
        %v531 = vld [vmem:[#allocation5 + $0x38] sm:$0xff]
        %v532 = vld [vmem:[#allocation5 + $0x60] sm:$0xff]
        %v533 = vld [vmem:[#allocation5 + $0x88] sm:$0xff]
        %v534 = vld [vmem:[#allocation5 + $0xb0] sm:$0xff]
        %v535 = vld [vmem:[#allocation5 + $0xd8] sm:$0xff]
        %v536 = vld [vmem:[#allocation5 + $0x100] sm:$0xff]
        %v537 = vld [vmem:[#allocation5 + $0x128] sm:$0xff]
        %v538 = vld [vmem:[#allocation5 + $0x150] sm:$0xff]
        %v539 = vld [vmem:[#allocation5 + $0x178] sm:$0xff]
        %v540 = vld [vmem:[#allocation5 + $0x1a0] sm:$0xff]
        %v541 = vld [vmem:[#allocation5 + $0x1c8] sm:$0xff]
        %v542 = vld [vmem:[#allocation5 + $0x1f0] sm:$0xff]
        %v543 = vld [vmem:[#allocation5 + $0x218] sm:$0xff]
        %v544 = vld [vmem:[#allocation5 + $0x240] sm:$0xff]
        %v545 = vld [vmem:[#allocation5 + $0x268] sm:$0xff]
        %v546 = vld [vmem:[%s3 + $0x3] sm:$0x1]
        %v548 = vlaneseq
        %v549 = vshrl.u32 %v548, 7
        %v550 = vsub.s32 0, %v549
        %v551 = vrot.slane %v546, %v550
        %553 = vmatprep.subr.mxu0 0.0
        %554 = vmatpush1.msra.mxu0 %v545
        %555 = vmatprep.subr.mxu0 0.0
        %556 = vmatpush1.msra.mxu0 %v544
        %557 = vmatprep.subr.mxu0 0.0
        %558 = vmatpush1.msra.mxu0 %v543
        %559 = vmatprep.subr.mxu0 0.0
        %560 = vmatpush1.msra.mxu0 %v542
        %561 = vmatprep.subr.mxu0 0.0
        %562 = vmatpush1.msra.mxu0 %v541
        %563 = vmatprep.subr.mxu0 0.0
        %564 = vmatpush1.msra.mxu0 %v540
        %565 = vmatprep.subr.mxu0 0.0
        %566 = vmatpush1.msra.mxu0 %v539
        %567 = vmatprep.subr.mxu0 0.0
        %568 = vmatpush1.msra.mxu0 %v538
        %569 = vmatprep.subr.mxu0 0.0
        %570 = vmatpush1.msra.mxu0 %v537
        %571 = vmatprep.subr.mxu0 0.0
        %572 = vmatpush1.msra.mxu0 %v536
        %573 = vmatprep.subr.mxu0 0.0
        %574 = vmatpush1.msra.mxu0 %v535
        %575 = vmatprep.subr.mxu0 0.0
        %576 = vmatpush1.msra.mxu0 %v534
        %577 = vmatprep.subr.mxu0 0.0
        %578 = vmatpush1.msra.mxu0 %v533
        %579 = vmatprep.subr.mxu0 0.0
        %580 = vmatpush1.msra.mxu0 %v532
        %581 = vmatprep.subr.mxu0 0.0
        %582 = vmatpush1.msra.mxu0 %v531
        %583 = vmatprep.subr.mxu0 0.0
        %584 = vmatpush1.msra.mxu0 %v530
        %585 = vmatprep.subr.mxu0 0.0
        %586 = vmatpush2.msra.mxu0 0.0
        %587 = vmatprep.subr.mxu0 0.0
        %588 = vmatpush2.msra.mxu0 0.0
        %589 = vmatprep.subr.mxu0 0.0
        %590 = vmatpush2.msra.mxu0 0.0
        %591 = vmatprep.subr.mxu0 0.0
        %592 = vmatpush2.msra.mxu0 0.0
        %593 = vmatprep.subr.mxu0 0.0
        %594 = vmatpush2.msra.mxu0 0.0
        %595 = vmatprep.subr.mxu0 0.0
        %596 = vmatpush2.msra.mxu0 0.0
        %597 = vmatprep.subr.mxu0 0.0
        %598 = vmatpush2.msra.mxu0 0.0
        %599 = vmatprep.subr.mxu0 0.0
        %600 = vmatpush2.msra.mxu0 0.0
        %601 = vmatprep.subr.mxu0 0.0
        %602 = vmatpush2.msra.mxu0 0.0
        %603 = vmatprep.subr.mxu0 0.0
        %604 = vmatpush2.msra.mxu0 0.0
        %605 = vmatprep.subr.mxu0 0.0
        %606 = vmatpush2.msra.mxu0 0.0
        %607 = vmatprep.subr.mxu0 0.0
        %608 = vmatpush2.msra.mxu0 0.0
        %609 = vmatprep.subr.mxu0 0.0
        %610 = vmatpush2.msra.mxu0 0.0
        %611 = vmatprep.subr.mxu0 0.0
        %612 = vmatpush2.msra.mxu0 0.0
        %613 = vmatprep.subr.mxu0 0.0
        %614 = vmatpush2.msra.mxu0 0.0
        %615 = vmatprep.subr.mxu0 0.0
        %616 = vmatpush2.msra.mxu0 0.0
        %617 = vmatprep.mubr.f32.mxu0 0.0
        %618 = vmatmul.mubr.f32.gmra.mxu0 %v522
        %v619 = vpop.f32.mrf.mxu0
        %v620 = vadd.f32 %v551, %v619
        %v621 = vpop.f32.mrf.mxu0
        %622 = vmatprep.mubr.f32.mxu0 0.0
        %623 = vmatmul.mubr.f32.gmra.mxu0 %v527
        %v624 = vpop.f32.mrf.mxu0
        %v625 = vadd.f32 %v551, %v624
        %v626 = vpop.f32.mrf.mxu0
        %627 = vdwg.mxu0
        %v628 = vmax.f32 %v620, 0.0
        %v629 = vmax.f32 %v625, 0.0
        %v630 = vld [vmem:[#allocation5 + $0x18] sm:$0xff]
        %v631 = vld [vmem:[#allocation5 + $0x40] sm:$0xff]
        %v632 = vld [vmem:[#allocation5 + $0x68] sm:$0xff]
        %v633 = vld [vmem:[#allocation5 + $0x90] sm:$0xff]
        %v634 = vld [vmem:[#allocation5 + $0xb8] sm:$0xff]
        %v635 = vld [vmem:[#allocation5 + $0xe0] sm:$0xff]
        %v636 = vld [vmem:[#allocation5 + $0x108] sm:$0xff]
        %v637 = vld [vmem:[#allocation5 + $0x130] sm:$0xff]
        %v638 = vld [vmem:[#allocation5 + $0x158] sm:$0xff]
        %v639 = vld [vmem:[#allocation5 + $0x180] sm:$0xff]
        %v640 = vld [vmem:[#allocation5 + $0x1a8] sm:$0xff]
        %v641 = vld [vmem:[#allocation5 + $0x1d0] sm:$0xff]
        %v642 = vld [vmem:[#allocation5 + $0x1f8] sm:$0xff]
        %v643 = vld [vmem:[#allocation5 + $0x220] sm:$0xff]
        %v644 = vld [vmem:[#allocation5 + $0x248] sm:$0xff]
        %v645 = vld [vmem:[#allocation5 + $0x270] sm:$0xff]
        %v646 = vld [vmem:[%s3 + $0x4] sm:$0x1]
        %v648 = vlaneseq
        %v649 = vshrl.u32 %v648, 7
        %v650 = vsub.s32 0, %v649
        %v651 = vrot.slane %v646, %v650
        %653 = vmatprep.subr.mxu0 0.0
        %654 = vmatpush1.msra.mxu0 %v645
        %655 = vmatprep.subr.mxu0 0.0
        %656 = vmatpush1.msra.mxu0 %v644
        %657 = vmatprep.subr.mxu0 0.0
        %658 = vmatpush1.msra.mxu0 %v643
        %659 = vmatprep.subr.mxu0 0.0
        %660 = vmatpush1.msra.mxu0 %v642
        %661 = vmatprep.subr.mxu0 0.0
        %662 = vmatpush1.msra.mxu0 %v641
        %663 = vmatprep.subr.mxu0 0.0
        %664 = vmatpush1.msra.mxu0 %v640
        %665 = vmatprep.subr.mxu0 0.0
        %666 = vmatpush1.msra.mxu0 %v639
        %667 = vmatprep.subr.mxu0 0.0
        %668 = vmatpush1.msra.mxu0 %v638
        %669 = vmatprep.subr.mxu0 0.0
        %670 = vmatpush1.msra.mxu0 %v637
        %671 = vmatprep.subr.mxu0 0.0
        %672 = vmatpush1.msra.mxu0 %v636
        %673 = vmatprep.subr.mxu0 0.0
        %674 = vmatpush1.msra.mxu0 %v635
        %675 = vmatprep.subr.mxu0 0.0
        %676 = vmatpush1.msra.mxu0 %v634
        %677 = vmatprep.subr.mxu0 0.0
        %678 = vmatpush1.msra.mxu0 %v633
        %679 = vmatprep.subr.mxu0 0.0
        %680 = vmatpush1.msra.mxu0 %v632
        %681 = vmatprep.subr.mxu0 0.0
        %682 = vmatpush1.msra.mxu0 %v631
        %683 = vmatprep.subr.mxu0 0.0
        %684 = vmatpush1.msra.mxu0 %v630
        %685 = vmatprep.subr.mxu0 0.0
        %686 = vmatpush2.msra.mxu0 0.0
        %687 = vmatprep.subr.mxu0 0.0
        %688 = vmatpush2.msra.mxu0 0.0
        %689 = vmatprep.subr.mxu0 0.0
        %690 = vmatpush2.msra.mxu0 0.0
        %691 = vmatprep.subr.mxu0 0.0
        %692 = vmatpush2.msra.mxu0 0.0
        %693 = vmatprep.subr.mxu0 0.0
        %694 = vmatpush2.msra.mxu0 0.0
        %695 = vmatprep.subr.mxu0 0.0
        %696 = vmatpush2.msra.mxu0 0.0
        %697 = vmatprep.subr.mxu0 0.0
        %698 = vmatpush2.msra.mxu0 0.0
        %699 = vmatprep.subr.mxu0 0.0
        %700 = vmatpush2.msra.mxu0 0.0
        %701 = vmatprep.subr.mxu0 0.0
        %702 = vmatpush2.msra.mxu0 0.0
        %703 = vmatprep.subr.mxu0 0.0
        %704 = vmatpush2.msra.mxu0 0.0
        %705 = vmatprep.subr.mxu0 0.0
        %706 = vmatpush2.msra.mxu0 0.0
        %707 = vmatprep.subr.mxu0 0.0
        %708 = vmatpush2.msra.mxu0 0.0
        %709 = vmatprep.subr.mxu0 0.0
        %710 = vmatpush2.msra.mxu0 0.0
        %711 = vmatprep.subr.mxu0 0.0
        %712 = vmatpush2.msra.mxu0 0.0
        %713 = vmatprep.subr.mxu0 0.0
        %714 = vmatpush2.msra.mxu0 0.0
        %715 = vmatprep.subr.mxu0 0.0
        %716 = vmatpush2.msra.mxu0 0.0
        %717 = vmatprep.mubr.f32.mxu0 0.0
        %718 = vmatmul.mubr.f32.gmra.mxu0 %v628
        %v719 = vpop.f32.mrf.mxu0
        %v720 = vadd.f32 %v651, %v719
        %v721 = vpop.f32.mrf.mxu0
        %722 = vmatprep.mubr.f32.mxu0 0.0
        %723 = vmatmul.mubr.f32.gmra.mxu0 %v629
        %v724 = vpop.f32.mrf.mxu0
        %v725 = vadd.f32 %v651, %v724
        %v726 = vpop.f32.mrf.mxu0
        %727 = vdwg.mxu0
        %v728 = vmax.f32 %v720, 0.0
        %v729 = vmax.f32 %v725, 0.0
        %v730 = vld [vmem:[#allocation5 + $0x20] sm:$0xff]
        %v731 = vld [vmem:[#allocation5 + $0x48] sm:$0xff]
        %v732 = vld [vmem:[#allocation5 + $0x70] sm:$0xff]
        %v733 = vld [vmem:[#allocation5 + $0x98] sm:$0xff]
        %v734 = vld [vmem:[#allocation5 + $0xc0] sm:$0xff]
        %v735 = vld [vmem:[#allocation5 + $0xe8] sm:$0xff]
        %v736 = vld [vmem:[#allocation5 + $0x110] sm:$0xff]
        %v737 = vld [vmem:[#allocation5 + $0x138] sm:$0xff]
        %v738 = vld [vmem:[#allocation5 + $0x160] sm:$0xff]
        %v739 = vld [vmem:[#allocation5 + $0x188] sm:$0xff]
        %v740 = vld [vmem:[#allocation5 + $0x1b0] sm:$0xff]
        %v741 = vld [vmem:[#allocation5 + $0x1d8] sm:$0xff]
        %v742 = vld [vmem:[#allocation5 + $0x200] sm:$0xff]
        %v743 = vld [vmem:[#allocation5 + $0x228] sm:$0xff]
        %v744 = vld [vmem:[#allocation5 + $0x250] sm:$0xff]
        %v745 = vld [vmem:[#allocation5 + $0x278] sm:$0xff]
        %v746 = vld [vmem:[%s3 + $0x5] sm:$0x1]
        %v748 = vlaneseq
        %v749 = vshrl.u32 %v748, 7
        %v750 = vsub.s32 0, %v749
        %v751 = vrot.slane %v746, %v750
        %753 = vmatprep.subr.mxu0 0.0
        %754 = vmatpush1.msra.mxu0 %v745
        %755 = vmatprep.subr.mxu0 0.0
        %756 = vmatpush1.msra.mxu0 %v744
        %757 = vmatprep.subr.mxu0 0.0
        %758 = vmatpush1.msra.mxu0 %v743
        %759 = vmatprep.subr.mxu0 0.0
        %760 = vmatpush1.msra.mxu0 %v742
        %761 = vmatprep.subr.mxu0 0.0
        %762 = vmatpush1.msra.mxu0 %v741
        %763 = vmatprep.subr.mxu0 0.0
        %764 = vmatpush1.msra.mxu0 %v740
        %765 = vmatprep.subr.mxu0 0.0
        %766 = vmatpush1.msra.mxu0 %v739
        %767 = vmatprep.subr.mxu0 0.0
        %768 = vmatpush1.msra.mxu0 %v738
        %769 = vmatprep.subr.mxu0 0.0
        %770 = vmatpush1.msra.mxu0 %v737
        %771 = vmatprep.subr.mxu0 0.0
        %772 = vmatpush1.msra.mxu0 %v736
        %773 = vmatprep.subr.mxu0 0.0
        %774 = vmatpush1.msra.mxu0 %v735
        %775 = vmatprep.subr.mxu0 0.0
        %776 = vmatpush1.msra.mxu0 %v734
        %777 = vmatprep.subr.mxu0 0.0
        %778 = vmatpush1.msra.mxu0 %v733
        %779 = vmatprep.subr.mxu0 0.0
        %780 = vmatpush1.msra.mxu0 %v732
        %781 = vmatprep.subr.mxu0 0.0
        %782 = vmatpush1.msra.mxu0 %v731
        %783 = vmatprep.subr.mxu0 0.0
        %784 = vmatpush1.msra.mxu0 %v730
        %785 = vmatprep.subr.mxu0 0.0
        %786 = vmatpush2.msra.mxu0 0.0
        %787 = vmatprep.subr.mxu0 0.0
        %788 = vmatpush2.msra.mxu0 0.0
        %789 = vmatprep.subr.mxu0 0.0
        %790 = vmatpush2.msra.mxu0 0.0
        %791 = vmatprep.subr.mxu0 0.0
        %792 = vmatpush2.msra.mxu0 0.0
        %793 = vmatprep.subr.mxu0 0.0
        %794 = vmatpush2.msra.mxu0 0.0
        %795 = vmatprep.subr.mxu0 0.0
        %796 = vmatpush2.msra.mxu0 0.0
        %797 = vmatprep.subr.mxu0 0.0
        %798 = vmatpush2.msra.mxu0 0.0
        %799 = vmatprep.subr.mxu0 0.0
        %800 = vmatpush2.msra.mxu0 0.0
        %801 = vmatprep.subr.mxu0 0.0
        %802 = vmatpush2.msra.mxu0 0.0
        %803 = vmatprep.subr.mxu0 0.0
        %804 = vmatpush2.msra.mxu0 0.0
        %805 = vmatprep.subr.mxu0 0.0
        %806 = vmatpush2.msra.mxu0 0.0
        %807 = vmatprep.subr.mxu0 0.0
        %808 = vmatpush2.msra.mxu0 0.0
        %809 = vmatprep.subr.mxu0 0.0
        %810 = vmatpush2.msra.mxu0 0.0
        %811 = vmatprep.subr.mxu0 0.0
        %812 = vmatpush2.msra.mxu0 0.0
        %813 = vmatprep.subr.mxu0 0.0
        %814 = vmatpush2.msra.mxu0 0.0
        %815 = vmatprep.subr.mxu0 0.0
        %816 = vmatpush2.msra.mxu0 0.0
        %817 = vmatprep.mubr.f32.mxu0 0.0
        %818 = vmatmul.mubr.f32.gmra.mxu0 %v728
        %v819 = vpop.f32.mrf.mxu0
        %v820 = vadd.f32 %v751, %v819
        %v821 = vpop.f32.mrf.mxu0
        %822 = vmatprep.mubr.f32.mxu0 0.0
        %823 = vmatmul.mubr.f32.gmra.mxu0 %v729
        %v824 = vpop.f32.mrf.mxu0
        %v825 = vadd.f32 %v751, %v824
        %v826 = vpop.f32.mrf.mxu0
        %827 = vdwg.mxu0
        %828 = vst [vmem:[%s221] sm:$0xff] %v820
        %829 = vst [vmem:[%s221 + $0x8] sm:$0xff] %v825
        %s830 = sand.u32 %s117, 1
        %s831 = scalar_lea.sflag [#allocation4], %s830
        %s832 = sand.u32 %s117, 1
        %s833 = smul.addr %s832, 16
        %s834 = scalar_lea.vmem [#allocation7], %s833
        // Predicated region
        $region45: #{autoencoder_forward.1} parent=35 // pred_check
          %p835 = pneg %p127
        $region46: #{autoencoder_forward.1} parent=35 // pred_check_branch
          %837 = sbr.rel (%p835) target = $region48
        $region47: #{autoencoder_forward.1} parent=35 // pred_region
          %s838 = smul.u32 2, %s20
          %s840 = ssub.s32 256, 256
          %841 = vsyncadd %s831, %s840
          %s842 = smul.addr %s838, 128
          %s843 = scalar_lea.hbm %s4, %s842
          %s844 = sshll.u32 %s834, 4
          %s845 = int_to_ptr.vmem [resolvable:$true] %s844
          %850 = dma.vmem_to_hbm [thread:$0]  %s845, 256, %s843, %s831, 128, 128, 8
        $region48: #{autoencoder_forward.1} parent=35 // pred_fallthru
          _
      $region36: #{autoencoder_forward.1} parent=5 // pred_fallthru
        _
      %p851 = scmp.le.s32.totalorder 2, %s15
      // Predicated region
      $region49: #{autoencoder_forward.1} parent=5 // pred_check
        %p852 = pneg %p851
      $region50: #{autoencoder_forward.1} parent=5 // pred_check_branch
        %854 = sbr.rel (%p852) target = $region52
      $region51: #{autoencoder_forward.1} parent=5 // pred_region
        %s855 = ssub.s32 %s15, 2
        // Predicated region
        $region53: #{autoencoder_forward.1} parent=51 // pred_check
          %p856 = pneg %p133
        $region54: #{autoencoder_forward.1} parent=51 // pred_check_branch
          %858 = sbr.rel (%p856) target = $region56
        $region55: #{autoencoder_forward.1} parent=51 // pred_region
          %s859 = sand.u32 %s118, 1
          %s860 = scalar_lea.sflag [#allocation4], %s859
          %s861 = sand.u32 %s118, 1
          %s862 = smul.addr %s861, 16
          %s863 = scalar_lea.vmem [#allocation7], %s862
          %864 = dma.done %s860, 256
        $region56: #{autoencoder_forward.1} parent=51 // pred_fallthru
          _
      $region52: #{autoencoder_forward.1} parent=5 // pred_fallthru
        _
    $region6: #{autoencoder_forward.1} parent=1 // loop_footer
      %s19 = sadd.s32 1, %s15
    $region7: #{autoencoder_forward.1} parent=1 // loop_footer_branch
      %14 = sbr.rel target = $region3
    $region8: #{autoencoder_forward.1} parent=1 // loop_exit
      _
    %865 = vsyncpa [#allocation3], 1
    %s866 = scalar_lea.sflag [#allocation3], 1
    %867 = vsyncpa %s866, 1
    %868 = vsyncpa [#allocation6], 1
    %869 = vsyncpa [#allocation4], 1
    %s870 = scalar_lea.sflag [#allocation4], 1
    %871 = vsyncpa %s870, 1

</llo_original>
